<compile_context>
chip_gen: v5e
topology: v5e:2x2
jax: 0.10.0
libtpu: 0.0.40
codegen_flags: <defaults>
</compile_context>

<pallas_src>
import math
import jax
import jax.numpy as jnp
from jax.experimental import pallas as pl
from jax.experimental.pallas import tpu as pltpu

# -------------------- problem / architecture configuration --------------------
PROBLEM_DIM = 4                    # problem.dim
INTERVAL = (-1.0, 1.0)             # problem.interval
TERMINAL_TIME = 1.0                # problem.terminal_time
ARCH = [16, 16]                    # hidden architecture
# TODO(synk): activation_factory is user-supplied in the original module; fixed to ReLU here.

MEAN = [(INTERVAL[0] + INTERVAL[1]) / 2.0, (0.0 + TERMINAL_TIME) / 2.0]
STD = [(INTERVAL[1] - INTERVAL[0]) / math.sqrt(12.0),
       (TERMINAL_TIME - 0.0) / math.sqrt(12.0)]

DIM_IN = PROBLEM_DIM + 1           # grad_model=False
DIM_OUT = 1
NN_DIMS = [DIM_IN] + ARCH + [DIM_OUT]
N_LAYERS = len(NN_DIMS) - 1


def _roundup(n, m):
    return -(-n // m) * m


# Feature blocks concatenated over the forward pass: [x|t|1|pad, a0, a1].
BLOCK_IN_WIDTHS = [DIM_IN] + ARCH                    # [5, 16, 16]
BLOCK_PAD_WIDTHS = [_roundup(w, 8) for w in BLOCK_IN_WIDTHS]
BLOCK_PAD_OFFS = [0]
for _w in BLOCK_PAD_WIDTHS[:-1]:
    BLOCK_PAD_OFFS.append(BLOCK_PAD_OFFS[-1] + _w)   # [0, 8, 24]
FEAT_PAD = sum(BLOCK_PAD_WIDTHS)                     # feature-major scratch height (40)
XT_ROWS = BLOCK_PAD_WIDTHS[0]                        # rows occupied by [x|t|1|0|0] (8)
BIAS_ROW = DIM_IN                                    # the constant-one row (index 5)

# Row layout of the packed weight buffer: one (out_i padded to 8) slab per layer.
ROW_PAD_HEIGHTS = [_roundup(d, 8) for d in NN_DIMS[1:]]   # [16, 16, 8]
ROW_OFFS = [0]
for _h in ROW_PAD_HEIGHTS[:-1]:
    ROW_OFFS.append(ROW_OFFS[-1] + _h)                    # [0, 16, 32]
ROWS_PAD = sum(ROW_PAD_HEIGHTS)                           # 40

MACS_PER_EXAMPLE = sum(sum(NN_DIMS[:i + 1]) * NN_DIMS[i + 1] for i in range(N_LAYERS))

MAX_B_TILE = 8192   # per review: 2048-8192 amortizes per-step overhead; VMEM is tiny.


def _choose_tiling(batch):
    """Pick a large batch tile and an even number of grid steps (v7x dual-TC)."""
    b_min = max(256, _roundup(batch, 256))
    n_tiles = max(2, -(-b_min // MAX_B_TILE))
    if n_tiles % 2:
        n_tiles += 1
    b_tile = _roundup(-(-b_min // n_tiles), 128)
    return b_tile, b_tile * n_tiles


# ------------------------------ Pallas kernel ------------------------------
def densenet_kernel(xt_ref, w_ref, out_ref, h_ref):
    # Feature-major scratch rows: [x(4) | t(1) | 1 | 0 | 0 | a0(16) | a1(16)].
    # Standardization and biases are pre-folded into w_ref: row BIAS_ROW (the
    # constant 1) carries the bias, rows 6..7 only ever meet zero weight columns.
    h_ref[0:XT_ROWS, :] = xt_ref[...]

    for i in range(N_LAYERS):
        out_i = NN_DIMS[i + 1]
        r0, rows = ROW_OFFS[i], ROW_PAD_HEIGHTS[i]
        # Trim the contraction to rows already produced this step (8, 24, 40):
        # every row the dot reads has been written, so no zero-fill is needed.
        k = FEAT_PAD if i == N_LAYERS - 1 else BLOCK_PAD_OFFS[i + 1]
        z = jnp.dot(w_ref[r0:r0 + rows, 0:k], h_ref[0:k, :],
                    preferred_element_type=jnp.float32)
        if i == N_LAYERS - 1:
            out_ref[...] = z[0:DIM_OUT, :].astype(out_ref.dtype)   # lane-dense output
        else:
            # "Concatenation": ReLU activation written at its fixed 8-aligned offset.
            off = BLOCK_PAD_OFFS[i + 1]
            h_ref[off:off + out_i, :] = jnp.maximum(z[0:out_i, :], 0.0)


# ------------------------------- host glue ---------------------------------
def init_params(key):
    """PyTorch-default-style uniform init. Weights kept in PyTorch (out, in) layout."""
    params = []
    for i in range(N_LAYERS):
        fan_in = sum(NN_DIMS[: i + 1])
        fan_out = NN_DIMS[i + 1]
        key, kw, kb = jax.random.split(key, 3)
        bound = 1.0 / math.sqrt(fan_in)
        w = jax.random.uniform(kw, (fan_out, fan_in), jnp.float32, -bound, bound)
        b = jax.random.uniform(kb, (fan_out,), jnp.float32, -bound, bound)
        params.append((w, b))
    return params


def pack_params(params):
    """Pack all layer weights into one (ROWS_PAD, FEAT_PAD) slab.

    * xt columns are scaled by 1/std (standardization is affine) and the mean
      shift is accumulated into an effective bias,
    * the effective bias goes into the column that multiplies the constant-one
      input row (BIAS_ROW),
    * activation-block columns are remapped to their padded feature offsets,
    * columns 6..7 (unused xt padding rows) stay exactly zero.
    """
    inv_std = jnp.array([1.0 / STD[0]] * PROBLEM_DIM + [1.0 / STD[1]], jnp.float32)
    mean = jnp.array([MEAN[0]] * PROBLEM_DIM + [MEAN[1]], jnp.float32)
    w_packed = jnp.zeros((ROWS_PAD, FEAT_PAD), jnp.float32)
    for i, (w, b) in enumerate(params):
        out_i = w.shape[0]
        r0 = ROW_OFFS[i]
        w_xt = w[:, :DIM_IN]
        w_packed = w_packed.at[r0:r0 + out_i, 0:DIM_IN].set(w_xt * inv_std[None, :])
        b_eff = b - (w_xt * (mean * inv_std)[None, :]).sum(axis=1)
        w_packed = w_packed.at[r0:r0 + out_i, BIAS_ROW].set(b_eff)
        src = DIM_IN
        for blk_w, blk_off in zip(BLOCK_IN_WIDTHS[1:i + 1], BLOCK_PAD_OFFS[1:i + 1]):
            w_packed = w_packed.at[r0:r0 + out_i, blk_off:blk_off + blk_w].set(
                w[:, src:src + blk_w])
            src += blk_w
    return w_packed


@jax.jit
def densenet_forward(x, t, w_packed):
    batch = x.shape[0]
    b_tile, b_pad = _choose_tiling(batch)
    n_tiles = b_pad // b_tile

    # Single fused XLA prep pass: feature-major rows [x | t | 1 | 0 | 0], batch-padded.
    ones = jnp.ones((1, batch), jnp.float32)
    zeros = jnp.zeros((XT_ROWS - DIM_IN - 1, batch), jnp.float32)
    xt_t = jnp.concatenate(
        [x.astype(jnp.float32).T, t.astype(jnp.float32).T, ones, zeros], axis=0)
    xt_t = jnp.pad(xt_t, ((0, 0), (0, b_pad - batch)))        # (XT_ROWS, b_pad)

    out = pl.pallas_call(
        densenet_kernel,
        out_shape=jax.ShapeDtypeStruct((1, b_pad), jnp.float32),
        grid_spec=pltpu.PrefetchScalarGridSpec(
            num_scalar_prefetch=0,
            grid=(n_tiles,),
            in_specs=[
                pl.BlockSpec((XT_ROWS, b_tile), lambda i: (0, i)),      # batch-tiled input
                pl.BlockSpec((ROWS_PAD, FEAT_PAD), lambda i: (0, 0)),   # weights, VMEM-resident
            ],
            out_specs=pl.BlockSpec((1, b_tile), lambda i: (0, i)),      # lane-dense output
            scratch_shapes=[pltpu.VMEM((FEAT_PAD, b_tile), jnp.float32)],
        ),
        compiler_params=pltpu.CompilerParams(
            dimension_semantics=("parallel",),
        ),
        cost_estimate=pl.CostEstimate(
            flops=2 * b_pad * MACS_PER_EXAMPLE,
            transcendentals=0,
            bytes_accessed=4 * (b_pad * (XT_ROWS + DIM_OUT) + ROWS_PAD * FEAT_PAD),
        ),
    )(xt_t, w_packed)
    return out[0, :batch].reshape(batch, DIM_OUT)


def reference_forward(x, t, params):
    """Pure-JAX mirror of the PyTorch forward (with explicit concatenation)."""
    h = jnp.concatenate([(x - MEAN[0]) / STD[0], (t - MEAN[1]) / STD[1]], axis=1)
    for i, (w, b) in enumerate(params):
        z = h @ w.T + b
        if i == len(params) - 1:
            h = z
        else:
            h = jnp.concatenate([h, jnp.maximum(z, 0.0)], axis=1)
    return h


# ---------------------------------- main ------------------------------------
if __name__ == "__main__":
    key = jax.random.PRNGKey(0)
    kx, kt, kp = jax.random.split(key, 3)

    B = 512   # small test batch; exercises a 2-step grid (b_tile=256)
    x = jax.random.uniform(kx, (B, PROBLEM_DIM), jnp.float32, INTERVAL[0], INTERVAL[1])
    t = jax.random.uniform(kt, (B, 1), jnp.float32, 0.0, TERMINAL_TIME)

    params = init_params(kp)
    w_packed = pack_params(params)

    out = jax.block_until_ready(densenet_forward(x, t, w_packed))

    ref = reference_forward(x, t, params)
    assert out.shape == (B, DIM_OUT), out.shape
    assert jnp.allclose(out, ref, atol=1e-5, rtol=1e-5), float(jnp.abs(out - ref).max())

    print("KERNEL_OK")
</pallas_src>

<mosaic_0001>
module attributes {stable_mosaic.version = 11 : i64} {
  func.func @densenet_kernel(%arg0: i32, %arg1: memref<8x256xf32, #tpu.memory_space<vmem>>, %arg2: memref<40x40xf32, #tpu.memory_space<vmem>>, %arg3: memref<1x256xf32, #tpu.memory_space<vmem>>, %arg4: memref<40x256xf32, #tpu.memory_space<vmem>>) attributes {dimension_semantics = [#tpu.dimension_semantics<parallel>], iteration_bounds = array<i64: 2>, scalar_prefetch = 0 : i64, scratch_operands = 1 : i64, tpu.core_type = #tpu.core_type<tc>, window_params = [{transform_indices = @transform_0, window_bounds = array<i64: 8, 256>}, {pipeline_mode = #tpu.pipeline_mode<synchronous>, transform_indices = @transform_1, window_bounds = array<i64: 40, 40>}, {transform_indices = @transform_2, window_bounds = array<i64: 1, 256>}]} {
    %c0 = arith.constant 0 : index
    %c0_0 = arith.constant 0 : index
    %0 = vector.load %arg1[%c0, %c0_0] : memref<8x256xf32, #tpu.memory_space<vmem>>, vector<8x256xf32>
    %c0_1 = arith.constant 0 : index
    %c0_2 = arith.constant 0 : index
    %1 = vector.load %arg4[%c0_1, %c0_2] : memref<40x256xf32, #tpu.memory_space<vmem>>, vector<8x256xf32>
    tpu.vector_store %arg4[%c0_1, %c0_2], %0 {strides = array<i32>} : memref<40x256xf32, #tpu.memory_space<vmem>>, vector<8x256xf32>,
    %c0_3 = arith.constant 0 : index
    %c0_4 = arith.constant 0 : index
    %2 = vector.load %arg2[%c0_3, %c0_4] : memref<40x40xf32, #tpu.memory_space<vmem>>, vector<16x8xf32>
    %c0_5 = arith.constant 0 : index
    %c0_6 = arith.constant 0 : index
    %3 = vector.load %arg4[%c0_5, %c0_6] : memref<40x256xf32, #tpu.memory_space<vmem>>, vector<8x256xf32>
    %cst = arith.constant dense<0.000000e+00> : vector<16x256xf32>
    %4 = tpu.matmul %2, %3, %cst {dimension_numbers = #tpu.dot_dimension_numbers<[1], [0], [0], [1], [0, 0, 1, 1], [], []>} : vector<16x8xf32>, vector<8x256xf32>, vector<16x256xf32> -> vector<16x256xf32>
    %cst_7 = arith.constant 0.000000e+00 : f32
    %5 = vector.broadcast %cst_7 : f32 to vector<16x256xf32>
    %6 = arith.maximumf %4, %5 : vector<16x256xf32>
    %c8 = arith.constant 8 : index
    %c0_8 = arith.constant 0 : index
    %7 = vector.load %arg4[%c8, %c0_8] : memref<40x256xf32, #tpu.memory_space<vmem>>, vector<16x256xf32>
    tpu.vector_store %arg4[%c8, %c0_8], %6 {strides = array<i32>} : memref<40x256xf32, #tpu.memory_space<vmem>>, vector<16x256xf32>,
    %c16 = arith.constant 16 : index
    %c0_9 = arith.constant 0 : index
    %8 = vector.load %arg2[%c16, %c0_9] : memref<40x40xf32, #tpu.memory_space<vmem>>, vector<16x24xf32>
    %c0_10 = arith.constant 0 : index
    %c0_11 = arith.constant 0 : index
    %9 = vector.load %arg4[%c0_10, %c0_11] : memref<40x256xf32, #tpu.memory_space<vmem>>, vector<24x256xf32>
    %cst_12 = arith.constant dense<0.000000e+00> : vector<16x256xf32>
    %10 = tpu.matmul %8, %9, %cst_12 {dimension_numbers = #tpu.dot_dimension_numbers<[1], [0], [0], [1], [0, 0, 1, 1], [], []>} : vector<16x24xf32>, vector<24x256xf32>, vector<16x256xf32> -> vector<16x256xf32>
    %cst_13 = arith.constant 0.000000e+00 : f32
    %11 = vector.broadcast %cst_13 : f32 to vector<16x256xf32>
    %12 = arith.maximumf %10, %11 : vector<16x256xf32>
    %c24 = arith.constant 24 : index
    %c0_14 = arith.constant 0 : index
    %13 = vector.load %arg4[%c24, %c0_14] : memref<40x256xf32, #tpu.memory_space<vmem>>, vector<16x256xf32>
    tpu.vector_store %arg4[%c24, %c0_14], %12 {strides = array<i32>} : memref<40x256xf32, #tpu.memory_space<vmem>>, vector<16x256xf32>,
    %c32 = arith.constant 32 : index
    %c0_15 = arith.constant 0 : index
    %14 = vector.load %arg2[%c32, %c0_15] : memref<40x40xf32, #tpu.memory_space<vmem>>, vector<8x40xf32>
    %c0_16 = arith.constant 0 : index
    %c0_17 = arith.constant 0 : index
    %15 = vector.load %arg4[%c0_16, %c0_17] : memref<40x256xf32, #tpu.memory_space<vmem>>, vector<40x256xf32>
    %cst_18 = arith.constant dense<0.000000e+00> : vector<8x256xf32>
    %16 = tpu.matmul %14, %15, %cst_18 {dimension_numbers = #tpu.dot_dimension_numbers<[1], [0], [0], [1], [0, 0, 1, 1], [], []>} : vector<8x40xf32>, vector<40x256xf32>, vector<8x256xf32> -> vector<8x256xf32>
    %17 = vector.extract_strided_slice %16 {offsets = [0, 0], sizes = [1, 256], strides = [1, 1]} : vector<8x256xf32> to vector<1x256xf32>
    %c0_19 = arith.constant 0 : index
    %c0_20 = arith.constant 0 : index
    %18 = vector.load %arg3[%c0_19, %c0_20] : memref<1x256xf32, #tpu.memory_space<vmem>>, vector<1x256xf32>
    tpu.vector_store %arg3[%c0_19, %c0_20], %17 {strides = array<i32>} : memref<1x256xf32, #tpu.memory_space<vmem>>, vector<1x256xf32>,
    return
  }
  func.func @transform_0(%arg0: i32) -> (i32, i32) {
    %c0_i32 = arith.constant 0 : i32
    %c0_i32_0 = arith.constant 0 : i32
    return %c0_i32, %arg0 : i32, i32
  }
  func.func @transform_1(%arg0: i32) -> (i32, i32) {
    %c0_i32 = arith.constant 0 : i32
    %c0_i32_0 = arith.constant 0 : i32
    %c0_i32_1 = arith.constant 0 : i32
    return %c0_i32, %c0_i32_0 : i32, i32
  }
  func.func @transform_2(%arg0: i32) -> (i32, i32) {
    %c0_i32 = arith.constant 0 : i32
    %c0_i32_0 = arith.constant 0 : i32
    return %c0_i32, %arg0 : i32, i32
  }
}

</mosaic_0001>

<llo_original>
// kernel: densenet_forward.1
$region0: #{densenet_forward.1}
  #allocation0 [shape = 'u32[]', space=smem, size = 0x4, offset = 0x4, fixed_abs, tag = 'smem constant byte address 0x4 - core index']
  #allocation1 [shape = 'u32[72,128]{1,0:T(1,128)}', space=vmem, size = 0x9000, scoped, tag = 'internal scratch']
  #allocation2 [shape = 'f32[40,256]{1,0:T(8,128)}', space=vmem, size = 0xa000, scoped, tag = 'scratch operand']
  %s0 = inlined_call_operand.vmem [shape: f32[8,512], index: 0, kind: input, shape index: {}]
  %s1 = inlined_call_operand.vmem [shape: f32[40,40], index: 1, kind: input, shape index: {}]
  %s2 = inlined_call_operand.hbm [shape: f32[1,512], index: 2, kind: output, shape index: {}]
  %s3 = sld [smem:[#allocation0]]
  $region41: #{densenet_forward.1} parent=0
    _
  %s5 = ssub.s32 1, %s3
  %s6 = scalar_select 0, %s5, %s3
  $region1: #{densenet_forward.1} parent=0
    #allocation3 [shape = 'u8[2048]{0}', space=vmem, size = 0x800, scoped, tag = 'output window, operand 0']
    #allocation4 [shape = 's32[2]{0}', space=sflag, size = 0x8, scoped, tag = 'scoped memory for densenet_forward.1']
    %7 = vsyncpa [#allocation4], 0
    %s8 = scalar_lea.sflag [#allocation4], 1
    %9 = vsyncpa %s8, 0
    loop: start=0, step=1, limit=4
    $region2: #{densenet_forward.1} parent=1 // loop_pre_header
      _
    $region3: #{densenet_forward.1} parent=1 // loop_header
      %s11 = sphi 0, %s15
      %p12 = scmp.ge.s32.totalorder %s11, 4
      %s21 = sphi 0, %s23
      %s24 = sphi 0, %s21
      %s25 = sphi 0, %s24
      %s41 = sphi 0, %s25
      %s45 = sphi 0, %s45
      %s47 = sphi 0, %s45
      %s48 = sphi 0, %s47
      %s62 = sphi 0, %s48
      %s68 = sphi 0, %s70
      %s71 = sphi 0, %s68
      %s72 = sphi 0, %s71
      %s88 = sphi 0, %s72
    $region4: #{densenet_forward.1} parent=1 // loop_header_branch
      %14 = sbr.rel (%p12) target = $region8
    $region5: #{densenet_forward.1} parent=1 // loop_body
      %s16 = ssub.s32 %s11, 1
      %s17 = ssub.s32 %s11, 2
      %s18 = sadd.s32 %s11, 1
      %s19 = ssub.s32 %s11, %s18
      %p20 = scmp.eq.s32.totalorder %s19, 0
      %s22 = sadd.s32 %s21, 1
      %s23 = scalar_select %p20, %s21, %s22
      %p26 = pneg %p20
      %p27 = scmp.eq.s32.totalorder %s11, 1
      %p28 = por %p26, %p27
      %p29 = scmp.ne.s32.totalorder %s21, %s24
      %p30 = scmp.eq.s32.totalorder %s11, 0
      %p31 = por %p29, %p30
      %p32 = scmp.ne.s32.totalorder %s21, %s24
      %p33 = scmp.eq.s32.totalorder %s16, 1
      %p34 = por %p32, %p33
      %p35 = scmp.ne.s32.totalorder %s24, %s25
      %p36 = scmp.eq.s32.totalorder %s16, 0
      %p37 = por %p35, %p36
      %p38 = scmp.ne.s32.totalorder %s24, %s25
      %p39 = scmp.eq.s32.totalorder %s17, 1
      %p40 = por %p38, %p39
      %p42 = scmp.ne.s32.totalorder %s25, %s41
      %p43 = scmp.eq.s32.totalorder %s17, 0
      %p44 = por %p42, %p43
      %s46 = sadd.s32 %s45, 1
      %p49 = scmp.eq.s32.totalorder %s11, 1
      %p50 = scmp.ne.s32.totalorder %s45, %s47
      %p51 = scmp.eq.s32.totalorder %s11, 0
      %p52 = por %p50, %p51
      %p53 = scmp.ne.s32.totalorder %s45, %s47
      %p54 = scmp.eq.s32.totalorder %s16, 1
      %p55 = por %p53, %p54
      %p56 = scmp.ne.s32.totalorder %s47, %s48
      %p57 = scmp.eq.s32.totalorder %s16, 0
      %p58 = por %p56, %p57
      %p59 = scmp.ne.s32.totalorder %s47, %s48
      %p60 = scmp.eq.s32.totalorder %s17, 1
      %p61 = por %p59, %p60
      %p63 = scmp.ne.s32.totalorder %s48, %s62
      %p64 = scmp.eq.s32.totalorder %s17, 0
      %p65 = por %p63, %p64
      %s66 = ssub.s32 %s11, %s18
      %p67 = scmp.eq.s32.totalorder %s66, 0
      %s69 = sadd.s32 %s68, 1
      %s70 = scalar_select %p67, %s68, %s69
      %p73 = pneg %p67
      %p74 = scmp.eq.s32.totalorder %s11, 1
      %p75 = por %p73, %p74
      %p76 = scmp.ne.s32.totalorder %s68, %s71
      %p77 = scmp.eq.s32.totalorder %s11, 0
      %p78 = por %p76, %p77
      %p79 = scmp.ne.s32.totalorder %s68, %s71
      %p80 = scmp.eq.s32.totalorder %s16, 1
      %p81 = por %p79, %p80
      %p82 = scmp.ne.s32.totalorder %s71, %s72
      %p83 = scmp.eq.s32.totalorder %s16, 0
      %p84 = por %p82, %p83
      %p85 = scmp.ne.s32.totalorder %s71, %s72
      %p86 = scmp.eq.s32.totalorder %s17, 1
      %p87 = por %p85, %p86
      %p89 = scmp.ne.s32.totalorder %s72, %s88
      %p90 = scmp.eq.s32.totalorder %s17, 0
      %p91 = por %p89, %p90
      %p92 = scmp.le.s32.totalorder 1, %s11
      %p93 = scmp.lt.s32.totalorder %s11, 3
      %p94 = pnand %p92, %p93
      %p95 = pneg %p94
      // Predicated region
      $region9: #{densenet_forward.1} parent=5 // pred_check
        _
      $region10: #{densenet_forward.1} parent=5 // pred_check_branch
        %97 = sbr.rel (%p94) target = $region12
      $region11: #{densenet_forward.1} parent=5 // pred_region
        %s98 = ssub.s32 %s11, 1
        // Predicated region
        $region13: #{densenet_forward.1} parent=11 // pred_check
          %p99 = pneg %p58
        $region14: #{densenet_forward.1} parent=11 // pred_check_branch
          %101 = sbr.rel (%p99) target = $region16
        $region15: #{densenet_forward.1} parent=11 // pred_region
          _
        $region16: #{densenet_forward.1} parent=11 // pred_fallthru
          _
      $region12: #{densenet_forward.1} parent=5 // pred_fallthru
        _
      %p102 = scmp.lt.s32.totalorder %s11, 2
      // Predicated region
      $region17: #{densenet_forward.1} parent=5 // pred_check
        %p103 = pneg %p102
      $region18: #{densenet_forward.1} parent=5 // pred_check_branch
        %105 = sbr.rel (%p103) target = $region20
      $region19: #{densenet_forward.1} parent=5 // pred_region
        // Predicated region
        $region21: #{densenet_forward.1} parent=19 // pred_check
          %p106 = pneg %p31
        $region22: #{densenet_forward.1} parent=19 // pred_check_branch
          %108 = sbr.rel (%p106) target = $region24
        $region23: #{densenet_forward.1} parent=19 // pred_region
          %s109 = smul.u32 2, %s11
          %p110 = scmp.lt.s32.totalorder %s109, 3
          %s111 = scalar_select %p110, %s109, 3
          %s112 = smul.addr %s111, 8
          %s113 = scalar_lea.vmem %s0, %s112
          %s114 = smul.u32 2, %s11
        $region24: #{densenet_forward.1} parent=19 // pred_fallthru
          _
      $region20: #{densenet_forward.1} parent=5 // pred_fallthru
        _
      %p115 = scmp.le.s32.totalorder 1, %s11
      %p116 = scmp.lt.s32.totalorder %s11, 3
      %p117 = pnand %p115, %p116
      %p118 = pneg %p117
      // Predicated region
      $region25: #{densenet_forward.1} parent=5 // pred_check
        _
      $region26: #{densenet_forward.1} parent=5 // pred_check_branch
        %120 = sbr.rel (%p117) target = $region28
      $region27: #{densenet_forward.1} parent=5 // pred_region
        %s121 = ssub.s32 %s11, 1
        %s122 = smul.u32 2, %s16
        %p123 = scmp.lt.s32.totalorder %s122, 3
        %s124 = scalar_select %p123, %s122, 3
        %s125 = smul.addr %s124, 8
        %s126 = scalar_lea.vmem %s0, %s125
        %p127 = pneg %p37
        %p128 = pneg %p34
        %p129 = pneg %p58
        %p130 = pneg %p55
        %p131 = pneg %p84
        %p132 = pneg %p81
        %s133 = sand.u32 %s71, 1
        %s134 = scalar_lea.sflag [#allocation4], %s133
        %s135 = sand.u32 %s71, 1
        %s136 = smul.addr %s135, 2
        %s137 = scalar_lea.vmem [#allocation3], %s136
        %s138 = smul.u32 2, %s16
        %p139 = scmp.lt.s32.totalorder %s138, 3
        %s140 = scalar_select %p139, %s138, 3
        %s141 = smul.addr %s140, 8
        %s142 = scalar_lea.vmem %s0, %s141
        %s143 = smul.u32 2, %s16
        %s144 = smul.u32 2, %s16
        %v145 = vld [vmem:[%s142] sm:$0xff]
        %v146 = vld [vmem:[%s142 + $0x8] sm:$0xff]
        %147 = vst [vmem:[#allocation2] sm:$0xff] %v145
        %148 = vst [vmem:[#allocation2 + $0x8] sm:$0xff] %v146
        %v149 = vld [vmem:[%s1] sm:$0xff]
        %v150 = vld [vmem:[%s1 + $0x8] sm:$0xff]
        %v151 = vld [vmem:[#allocation2] sm:$0xff]
        %v152 = vld [vmem:[#allocation2 + $0x8] sm:$0xff]
        %vm153 = vcmask 64512
        %v155 = vsel %vm153, %v149, 0
        %v158 = vsel %vm153, %v150, 0
        %160 = vmatpush.msra.mxu0 0.0
        %161 = vmatpush.msra.mxu0 0.0
        %162 = vmatpush.msra.mxu0 0.0
        %163 = vmatpush.msra.mxu0 0.0
        %164 = vmatpush.msra.mxu0 0.0
        %165 = vmatpush.msra.mxu0 0.0
        %166 = vmatpush.msra.mxu0 0.0
        %167 = vmatpush.msra.mxu0 0.0
        %168 = vmatpush.msra.mxu0 0.0
        %169 = vmatpush.msra.mxu0 0.0
        %170 = vmatpush.msra.mxu0 0.0
        %171 = vmatpush.msra.mxu0 0.0
        %172 = vmatpush.msra.mxu0 0.0
        %173 = vmatpush.msra.mxu0 0.0
        %174 = vmatpush.msra.mxu0 0.0
        %175 = vmatpush.msra.mxu0 %v151
        %176 = vmatmul.f32.gmra.mxu0 %v155
        %v177 = vpop.f32.mrf.mxu0
        %v178 = vadd.f32 0.0, %v177
        %179 = vmatmul.f32.gmra.mxu0 %v158
        %v180 = vpop.f32.mrf.mxu0
        %v181 = vadd.f32 0.0, %v180
        %182 = vdwg.mxu0
        %183 = vmatpush.msra.mxu0 0.0
        %184 = vmatpush.msra.mxu0 0.0
        %185 = vmatpush.msra.mxu0 0.0
        %186 = vmatpush.msra.mxu0 0.0
        %187 = vmatpush.msra.mxu0 0.0
        %188 = vmatpush.msra.mxu0 0.0
        %189 = vmatpush.msra.mxu0 0.0
        %190 = vmatpush.msra.mxu0 0.0
        %191 = vmatpush.msra.mxu0 0.0
        %192 = vmatpush.msra.mxu0 0.0
        %193 = vmatpush.msra.mxu0 0.0
        %194 = vmatpush.msra.mxu0 0.0
        %195 = vmatpush.msra.mxu0 0.0
        %196 = vmatpush.msra.mxu0 0.0
        %197 = vmatpush.msra.mxu0 0.0
        %198 = vmatpush.msra.mxu0 %v152
        %199 = vmatmul.f32.gmra.mxu0 %v155
        %v200 = vpop.f32.mrf.mxu0
        %v201 = vadd.f32 0.0, %v200
        %202 = vmatmul.f32.gmra.mxu0 %v158
        %v203 = vpop.f32.mrf.mxu0
        %v204 = vadd.f32 0.0, %v203
        %205 = vdwg.mxu0
        %v206 = vmax.f32 %v178, 0.0
        %v207 = vmax.f32 %v201, 0.0
        %v208 = vmax.f32 %v181, 0.0
        %v209 = vmax.f32 %v204, 0.0
        %210 = vst [vmem:[#allocation2 + $0x10] sm:$0xff] %v206
        %211 = vst [vmem:[#allocation2 + $0x18] sm:$0xff] %v207
        %212 = vst [vmem:[#allocation2 + $0x20] sm:$0xff] %v208
        %213 = vst [vmem:[#allocation2 + $0x28] sm:$0xff] %v209
        %v214 = vld [vmem:[%s1 + $0x10] sm:$0xff]
        %v215 = vld [vmem:[%s1 + $0x18] sm:$0xff]
        %v216 = vld [vmem:[#allocation2] sm:$0xff]
        %v217 = vld [vmem:[#allocation2 + $0x8] sm:$0xff]
        %v218 = vld [vmem:[#allocation2 + $0x10] sm:$0xff]
        %v219 = vld [vmem:[#allocation2 + $0x18] sm:$0xff]
        %v220 = vld [vmem:[#allocation2 + $0x20] sm:$0xff]
        %v221 = vld [vmem:[#allocation2 + $0x28] sm:$0xff]
        %vm222 = vcmask 195584
        %v224 = vsel %vm222, %v214, 0
        %v227 = vsel %vm222, %v215, 0
        %229 = vmatpush.msra.mxu0 0.0
        %230 = vmatpush.msra.mxu0 0.0
        %231 = vmatpush.msra.mxu0 0.0
        %232 = vmatpush.msra.mxu0 0.0
        %233 = vmatpush.msra.mxu0 0.0
        %234 = vmatpush.msra.mxu0 0.0
        %235 = vmatpush.msra.mxu0 0.0
        %236 = vmatpush.msra.mxu0 0.0
        %237 = vmatpush.msra.mxu0 0.0
        %238 = vmatpush.msra.mxu0 0.0
        %239 = vmatpush.msra.mxu0 0.0
        %240 = vmatpush.msra.mxu0 0.0
        %241 = vmatpush.msra.mxu0 0.0
        %242 = vmatpush.msra.mxu0 %v220
        %243 = vmatpush.msra.mxu0 %v218
        %244 = vmatpush.msra.mxu0 %v216
        %245 = vmatmul.f32.gmra.mxu0 %v224
        %v246 = vpop.f32.mrf.mxu0
        %v247 = vadd.f32 0.0, %v246
        %248 = vmatmul.f32.gmra.mxu0 %v227
        %v249 = vpop.f32.mrf.mxu0
        %v250 = vadd.f32 0.0, %v249
        %251 = vdwg.mxu0
        %252 = vmatpush.msra.mxu0 0.0
        %253 = vmatpush.msra.mxu0 0.0
        %254 = vmatpush.msra.mxu0 0.0
        %255 = vmatpush.msra.mxu0 0.0
        %256 = vmatpush.msra.mxu0 0.0
        %257 = vmatpush.msra.mxu0 0.0
        %258 = vmatpush.msra.mxu0 0.0
        %259 = vmatpush.msra.mxu0 0.0
        %260 = vmatpush.msra.mxu0 0.0
        %261 = vmatpush.msra.mxu0 0.0
        %262 = vmatpush.msra.mxu0 0.0
        %263 = vmatpush.msra.mxu0 0.0
        %264 = vmatpush.msra.mxu0 0.0
        %265 = vmatpush.msra.mxu0 %v221
        %266 = vmatpush.msra.mxu0 %v219
        %267 = vmatpush.msra.mxu0 %v217
        %268 = vmatmul.f32.gmra.mxu0 %v224
        %v269 = vpop.f32.mrf.mxu0
        %v270 = vadd.f32 0.0, %v269
        %271 = vmatmul.f32.gmra.mxu0 %v227
        %v272 = vpop.f32.mrf.mxu0
        %v273 = vadd.f32 0.0, %v272
        %274 = vdwg.mxu0
        %v275 = vmax.f32 %v247, 0.0
        %v276 = vmax.f32 %v270, 0.0
        %v277 = vmax.f32 %v250, 0.0
        %v278 = vmax.f32 %v273, 0.0
        %279 = vst [vmem:[#allocation2 + $0x30] sm:$0xff] %v275
        %280 = vst [vmem:[#allocation2 + $0x38] sm:$0xff] %v276
        %281 = vst [vmem:[#allocation2 + $0x40] sm:$0xff] %v277
        %282 = vst [vmem:[#allocation2 + $0x48] sm:$0xff] %v278
        %v283 = vld [vmem:[%s1 + $0x20] sm:$0xff]
        %v284 = vld [vmem:[#allocation2] sm:$0xff]
        %v285 = vld [vmem:[#allocation2 + $0x8] sm:$0xff]
        %v286 = vld [vmem:[#allocation2 + $0x10] sm:$0xff]
        %v287 = vld [vmem:[#allocation2 + $0x18] sm:$0xff]
        %v288 = vld [vmem:[#allocation2 + $0x20] sm:$0xff]
        %v289 = vld [vmem:[#allocation2 + $0x28] sm:$0xff]
        %v290 = vld [vmem:[#allocation2 + $0x30] sm:$0xff]
        %v291 = vld [vmem:[#allocation2 + $0x38] sm:$0xff]
        %v292 = vld [vmem:[#allocation2 + $0x40] sm:$0xff]
        %v293 = vld [vmem:[#allocation2 + $0x48] sm:$0xff]
        %vm294 = vcmask 326656
        %v296 = vsel %vm294, %v283, 0
        %298 = vmatpush.msra.mxu0 0.0
        %299 = vmatpush.msra.mxu0 0.0
        %300 = vmatpush.msra.mxu0 0.0
        %301 = vmatpush.msra.mxu0 0.0
        %302 = vmatpush.msra.mxu0 0.0
        %303 = vmatpush.msra.mxu0 0.0
        %304 = vmatpush.msra.mxu0 0.0
        %305 = vmatpush.msra.mxu0 0.0
        %306 = vmatpush.msra.mxu0 0.0
        %307 = vmatpush.msra.mxu0 0.0
        %308 = vmatpush.msra.mxu0 0.0
        %309 = vmatpush.msra.mxu0 %v292
        %310 = vmatpush.msra.mxu0 %v290
        %311 = vmatpush.msra.mxu0 %v288
        %312 = vmatpush.msra.mxu0 %v286
        %313 = vmatpush.msra.mxu0 %v284
        %314 = vmatmul.f32.gmra.mxu0 %v296
        %v315 = vpop.f32.mrf.mxu0
        %v316 = vadd.f32 0.0, %v315
        %317 = vdwg.mxu0
        %318 = vmatpush.msra.mxu0 0.0
        %319 = vmatpush.msra.mxu0 0.0
        %320 = vmatpush.msra.mxu0 0.0
        %321 = vmatpush.msra.mxu0 0.0
        %322 = vmatpush.msra.mxu0 0.0
        %323 = vmatpush.msra.mxu0 0.0
        %324 = vmatpush.msra.mxu0 0.0
        %325 = vmatpush.msra.mxu0 0.0
        %326 = vmatpush.msra.mxu0 0.0
        %327 = vmatpush.msra.mxu0 0.0
        %328 = vmatpush.msra.mxu0 0.0
        %329 = vmatpush.msra.mxu0 %v293
        %330 = vmatpush.msra.mxu0 %v291
        %331 = vmatpush.msra.mxu0 %v289
        %332 = vmatpush.msra.mxu0 %v287
        %333 = vmatpush.msra.mxu0 %v285
        %334 = vmatmul.f32.gmra.mxu0 %v296
        %v335 = vpop.f32.mrf.mxu0
        %v336 = vadd.f32 0.0, %v335
        %337 = vdwg.mxu0
        %v340 = vrot.slane %v336, 7
        %vm341 = vcmask 1040384
        %v342 = vsel %vm341, %v316, %v340
        %v344 = vlaneseq
        %vm345 = vcmp.ge.s32.totalorder %v344, 0
        %vm346 = vcmp.lt.s32.totalorder %v344, 256
        %vm347 = vmand %vm345, %vm346
        %348 = vst.msk [vmem:[%s137] sm:$0x3] %vm347, %v342
        %s349 = sand.u32 %s71, 1
        %s350 = scalar_lea.sflag [#allocation4], %s349
        %s351 = sand.u32 %s71, 1
        %s352 = smul.addr %s351, 2
        %s353 = scalar_lea.vmem [#allocation3], %s352
        // Predicated region
        $region29: #{densenet_forward.1} parent=27 // pred_check
          %p354 = pneg %p81
        $region30: #{densenet_forward.1} parent=27 // pred_check_branch
          %356 = sbr.rel (%p354) target = $region32
        $region31: #{densenet_forward.1} parent=27 // pred_region
          %s357 = smul.u32 2, %s16
          %359 = vsyncadd %s350, 0
          %s360 = scalar_lea.hbm %s2, %s357
          %s362 = sshll.u32 %s353, 4
          %s363 = int_to_ptr.vmem [resolvable:$true] %s362
          %s364 = sshll.u32 %s360, 4
          %s365 = int_to_ptr.hbm [resolvable:$true] %s364
          %367 = dma.vmem_to_hbm [thread:$0]  %s363, 32, %s365, %s350
        $region32: #{densenet_forward.1} parent=27 // pred_fallthru
          _
      $region28: #{densenet_forward.1} parent=5 // pred_fallthru
        _
      %p368 = scmp.le.s32.totalorder 2, %s11
      // Predicated region
      $region33: #{densenet_forward.1} parent=5 // pred_check
        %p369 = pneg %p368
      $region34: #{densenet_forward.1} parent=5 // pred_check_branch
        %371 = sbr.rel (%p369) target = $region36
      $region35: #{densenet_forward.1} parent=5 // pred_region
        %s372 = ssub.s32 %s11, 2
        // Predicated region
        $region37: #{densenet_forward.1} parent=35 // pred_check
          %p373 = pneg %p87
        $region38: #{densenet_forward.1} parent=35 // pred_check_branch
          %375 = sbr.rel (%p373) target = $region40
        $region39: #{densenet_forward.1} parent=35 // pred_region
          %s376 = sand.u32 %s72, 1
          %s377 = scalar_lea.sflag [#allocation4], %s376
          %s378 = sand.u32 %s72, 1
          %s379 = smul.addr %s378, 2
          %s380 = scalar_lea.vmem [#allocation3], %s379
          %382 = dma.done %s377, 32
        $region40: #{densenet_forward.1} parent=35 // pred_fallthru
          _
      $region36: #{densenet_forward.1} parent=5 // pred_fallthru
        _
    $region6: #{densenet_forward.1} parent=1 // loop_footer
      %s15 = sadd.s32 1, %s11
    $region7: #{densenet_forward.1} parent=1 // loop_footer_branch
      %10 = sbr.rel target = $region3
    $region8: #{densenet_forward.1} parent=1 // loop_exit
      _
    %383 = vsyncpa [#allocation4], 1
    %s384 = scalar_lea.sflag [#allocation4], 1
    %385 = vsyncpa %s384, 1

</llo_original>
